<compile_context>
chip_gen: v6e
topology: v6e:2x2x1
jax: 0.10.0
libtpu: 0.0.40
codegen_flags: <defaults>
</compile_context>

<pallas_src>
import functools

import jax
import jax.numpy as jnp
from jax.experimental import pallas as pl
from jax.experimental.pallas import tpu as pltpu

INPUT_SIZE = 16
HIDDEN1 = 64
HIDDEN2 = 32
OUTPUT_SIZE = 3
BATCH = 8


def _round_up(n, m):
    return ((n + m - 1) // m) * m


def _choose_tile(batch, cap=2048):
    """Rows per grid step: multiple of 8, <= cap, >=2 steps for medium batches
    (v7x megacore), padding kept small by balancing the step count."""
    b8 = _round_up(batch, 8)
    if b8 <= 16:
        return b8                      # launch-bound; single step
    n_tiles = max(2, -(-b8 // cap))    # >=2 steps so both v7x TCs get work
    return _round_up(-(-b8 // n_tiles), 8)


def mlp_kernel(x_ref, w1_ref, b1_ref, w2_ref, b2_ref, w3_ref, b3_ref, o_ref):
    # fc1 + ReLU  (bf16 MXU operands, f32 accumulate, f32 elementwise)
    x = x_ref[...]
    h1 = jnp.dot(x, w1_ref[...], preferred_element_type=jnp.float32) + b1_ref[...]
    h1 = jnp.maximum(h1, 0.0)
    # fc2 + ReLU
    h2 = jnp.dot(h1.astype(w2_ref.dtype), w2_ref[...],
                 preferred_element_type=jnp.float32) + b2_ref[...]
    h2 = jnp.maximum(h2, 0.0)
    # fc3 (true 3-wide output; compute is negligible so MXU underfill is fine)
    logits = jnp.dot(h2.astype(w3_ref.dtype), w3_ref[...],
                     preferred_element_type=jnp.float32) + b3_ref[...]
    # numerically stable softmax over the feature axis, exact normalization
    m = jnp.max(logits, axis=1, keepdims=True)
    e = jnp.exp(logits - m)
    denom = jnp.sum(e, axis=1, keepdims=True)
    o_ref[...] = (e / denom).astype(o_ref.dtype)


def prepare_params(w1, b1, w2, b2, w3, b3):
    """One-time parameter prep (hoisted out of the forward call path):
    bf16 MXU weights, f32 biases."""
    return (w1.astype(jnp.bfloat16), b1,
            w2.astype(jnp.bfloat16), b2,
            w3.astype(jnp.bfloat16), b3)


@functools.partial(jax.jit, static_argnames=())
def mlp_forward(x, w1, b1, w2, b2, w3, b3):
    batch = x.shape[0]
    tb = _choose_tile(batch)
    batch_p = _round_up(batch, tb)

    # Only activation prep stays in the call path.
    x_bf = x.astype(jnp.bfloat16)
    if batch_p != batch:
        x_bf = jnp.pad(x_bf, ((0, batch_p - batch), (0, 0)))

    n_tiles = batch_p // tb

    flops = 2 * batch_p * (INPUT_SIZE * HIDDEN1
                           + HIDDEN1 * HIDDEN2
                           + HIDDEN2 * OUTPUT_SIZE)
    bytes_accessed = (x_bf.size * 2 + w1.size * 2 + w2.size * 2 + w3.size * 2
                      + b1.size * 4 + b2.size * 4 + b3.size * 4
                      + batch_p * OUTPUT_SIZE * 4)

    out_p = pl.pallas_call(
        mlp_kernel,
        out_shape=jax.ShapeDtypeStruct((batch_p, OUTPUT_SIZE), jnp.float32),
        grid=(n_tiles,),
        in_specs=[
            pl.BlockSpec((tb, INPUT_SIZE), lambda i: (i, 0)),        # x (streams)
            pl.BlockSpec((INPUT_SIZE, HIDDEN1), lambda i: (0, 0)),   # w1 (resident)
            pl.BlockSpec((1, HIDDEN1), lambda i: (0, 0)),            # b1
            pl.BlockSpec((HIDDEN1, HIDDEN2), lambda i: (0, 0)),      # w2
            pl.BlockSpec((1, HIDDEN2), lambda i: (0, 0)),            # b2
            pl.BlockSpec((HIDDEN2, OUTPUT_SIZE), lambda i: (0, 0)),  # w3
            pl.BlockSpec((1, OUTPUT_SIZE), lambda i: (0, 0)),        # b3
        ],
        out_specs=pl.BlockSpec((tb, OUTPUT_SIZE), lambda i: (i, 0)),
        compiler_params=pltpu.CompilerParams(
            dimension_semantics=("parallel",)),
        cost_estimate=pl.CostEstimate(
            flops=flops,
            transcendentals=batch_p * OUTPUT_SIZE,
            bytes_accessed=bytes_accessed),
    )(x_bf, w1, b1, w2, b2, w3, b3)

    return out_p[:batch]


def init_params(key):
    # Deterministic init mimicking nn.Linear default (uniform +/- 1/sqrt(fan_in)).
    k1, k2, k3, k4, k5, k6 = jax.random.split(key, 6)

    def linear(kw, kb, fan_in, fan_out):
        bound = 1.0 / jnp.sqrt(fan_in)
        w = jax.random.uniform(kw, (fan_in, fan_out), jnp.float32, -bound, bound)
        b = jax.random.uniform(kb, (1, fan_out), jnp.float32, -bound, bound)
        return w, b

    w1, b1 = linear(k1, k2, INPUT_SIZE, HIDDEN1)
    w2, b2 = linear(k3, k4, HIDDEN1, HIDDEN2)
    w3, b3 = linear(k5, k6, HIDDEN2, OUTPUT_SIZE)
    return w1, b1, w2, b2, w3, b3


def mlp_reference(x, w1, b1, w2, b2, w3, b3):
    h1 = jnp.maximum(x @ w1 + b1, 0.0)
    h2 = jnp.maximum(h1 @ w2 + b2, 0.0)
    return jax.nn.softmax(h2 @ w3 + b3, axis=1)


if __name__ == "__main__":
    key = jax.random.PRNGKey(0)
    kx, kp = jax.random.split(key)
    x = jax.random.normal(kx, (BATCH, INPUT_SIZE), jnp.float32)
    params = init_params(kp)
    prepped = prepare_params(*params)   # one-time weight prep, outside call path

    out = mlp_forward(x, *prepped)
    jax.block_until_ready(out)

    # sanity: shape, softmax rows sum to 1, matches f32 reference within bf16 slack
    assert out.shape == (BATCH, OUTPUT_SIZE)
    assert jnp.allclose(jnp.sum(out, axis=1), 1.0, atol=1e-3)
    ref = mlp_reference(x, *params)
    assert jnp.allclose(out, ref, atol=5e-2)

    print("KERNEL_OK")
</pallas_src>

<mosaic_0001>
module attributes {stable_mosaic.version = 11 : i64} {
  func.func @mlp_kernel(%arg0: i32, %arg1: memref<8x16xbf16, #tpu.memory_space<vmem>>, %arg2: memref<16x64xbf16, #tpu.memory_space<vmem>>, %arg3: memref<1x64xf32, #tpu.memory_space<vmem>>, %arg4: memref<64x32xbf16, #tpu.memory_space<vmem>>, %arg5: memref<1x32xf32, #tpu.memory_space<vmem>>, %arg6: memref<32x3xbf16, #tpu.memory_space<vmem>>, %arg7: memref<1x3xf32, #tpu.memory_space<vmem>>, %arg8: memref<8x3xf32, #tpu.memory_space<vmem>>) attributes {dimension_semantics = [#tpu.dimension_semantics<parallel>], iteration_bounds = array<i64: 1>, scalar_prefetch = 0 : i64, scratch_operands = 0 : i64, tpu.core_type = #tpu.core_type<tc>, window_params = [{transform_indices = @transform_0, window_bounds = array<i64: 8, 16>}, {pipeline_mode = #tpu.pipeline_mode<synchronous>, transform_indices = @transform_1, window_bounds = array<i64: 16, 64>}, {pipeline_mode = #tpu.pipeline_mode<synchronous>, transform_indices = @transform_2, window_bounds = array<i64: 1, 64>}, {pipeline_mode = #tpu.pipeline_mode<synchronous>, transform_indices = @transform_3, window_bounds = array<i64: 64, 32>}, {pipeline_mode = #tpu.pipeline_mode<synchronous>, transform_indices = @transform_4, window_bounds = array<i64: 1, 32>}, {pipeline_mode = #tpu.pipeline_mode<synchronous>, transform_indices = @transform_5, window_bounds = array<i64: 32, 3>}, {pipeline_mode = #tpu.pipeline_mode<synchronous>, transform_indices = @transform_6, window_bounds = array<i64: 1, 3>}, {transform_indices = @transform_7, window_bounds = array<i64: 8, 3>}]} {
    %c0 = arith.constant 0 : index
    %c0_0 = arith.constant 0 : index
    %0 = vector.load %arg1[%c0, %c0_0] : memref<8x16xbf16, #tpu.memory_space<vmem>>, vector<8x16xbf16>
    %c0_1 = arith.constant 0 : index
    %c0_2 = arith.constant 0 : index
    %1 = vector.load %arg2[%c0_1, %c0_2] : memref<16x64xbf16, #tpu.memory_space<vmem>>, vector<16x64xbf16>
    %cst = arith.constant dense<0.000000e+00> : vector<8x64xf32>
    %2 = tpu.matmul %0, %1, %cst {dimension_numbers = #tpu.dot_dimension_numbers<[1], [0], [0], [1], [0, 0, 1, 1], [], []>} : vector<8x16xbf16>, vector<16x64xbf16>, vector<8x64xf32> -> vector<8x64xf32>
    %c0_3 = arith.constant 0 : index
    %c0_4 = arith.constant 0 : index
    %3 = vector.load %arg3[%c0_3, %c0_4] : memref<1x64xf32, #tpu.memory_space<vmem>>, vector<1x64xf32>
    %4 = vector.broadcast %3 : vector<1x64xf32> to vector<8x64xf32>
    %5 = arith.addf %2, %4 : vector<8x64xf32>
    %cst_5 = arith.constant 0.000000e+00 : f32
    %6 = vector.broadcast %cst_5 : f32 to vector<8x64xf32>
    %7 = arith.maximumf %5, %6 : vector<8x64xf32>
    %8 = arith.truncf %7 : vector<8x64xf32> to vector<8x64xbf16>
    %c0_6 = arith.constant 0 : index
    %c0_7 = arith.constant 0 : index
    %9 = vector.load %arg4[%c0_6, %c0_7] : memref<64x32xbf16, #tpu.memory_space<vmem>>, vector<64x32xbf16>
    %cst_8 = arith.constant dense<0.000000e+00> : vector<8x32xf32>
    %10 = tpu.matmul %8, %9, %cst_8 {dimension_numbers = #tpu.dot_dimension_numbers<[1], [0], [0], [1], [0, 0, 1, 1], [], []>} : vector<8x64xbf16>, vector<64x32xbf16>, vector<8x32xf32> -> vector<8x32xf32>
    %c0_9 = arith.constant 0 : index
    %c0_10 = arith.constant 0 : index
    %11 = vector.load %arg5[%c0_9, %c0_10] : memref<1x32xf32, #tpu.memory_space<vmem>>, vector<1x32xf32>
    %12 = vector.broadcast %11 : vector<1x32xf32> to vector<8x32xf32>
    %13 = arith.addf %10, %12 : vector<8x32xf32>
    %cst_11 = arith.constant 0.000000e+00 : f32
    %14 = vector.broadcast %cst_11 : f32 to vector<8x32xf32>
    %15 = arith.maximumf %13, %14 : vector<8x32xf32>
    %16 = arith.truncf %15 : vector<8x32xf32> to vector<8x32xbf16>
    %c0_12 = arith.constant 0 : index
    %c0_13 = arith.constant 0 : index
    %17 = vector.load %arg6[%c0_12, %c0_13] : memref<32x3xbf16, #tpu.memory_space<vmem>>, vector<32x3xbf16>
    %cst_14 = arith.constant dense<0.000000e+00> : vector<8x3xf32>
    %18 = tpu.matmul %16, %17, %cst_14 {dimension_numbers = #tpu.dot_dimension_numbers<[1], [0], [0], [1], [0, 0, 1, 1], [], []>} : vector<8x32xbf16>, vector<32x3xbf16>, vector<8x3xf32> -> vector<8x3xf32>
    %c0_15 = arith.constant 0 : index
    %c0_16 = arith.constant 0 : index
    %19 = vector.load %arg7[%c0_15, %c0_16] : memref<1x3xf32, #tpu.memory_space<vmem>>, vector<1x3xf32>
    %20 = vector.broadcast %19 : vector<1x3xf32> to vector<8x3xf32>
    %21 = arith.addf %18, %20 : vector<8x3xf32>
    %cst_17 = arith.constant dense<0xFF800000> : vector<8xf32>
    %22 = vector.multi_reduction <maximumf>, %21, %cst_17 [1] : vector<8x3xf32> to vector<8xf32>
    %23 = vector.shape_cast %22 : vector<8xf32> to vector<8x1xf32>
    %24 = vector.broadcast %23 : vector<8x1xf32> to vector<8x3xf32>
    %25 = arith.subf %21, %24 : vector<8x3xf32>
    %26 = math.exp %25 : vector<8x3xf32>
    %cst_18 = arith.constant dense<0.000000e+00> : vector<8xf32>
    %27 = vector.multi_reduction <add>, %26, %cst_18 [1] : vector<8x3xf32> to vector<8xf32>
    %28 = vector.shape_cast %27 : vector<8xf32> to vector<8x1xf32>
    %29 = vector.broadcast %28 : vector<8x1xf32> to vector<8x3xf32>
    %30 = arith.divf %26, %29 : vector<8x3xf32>
    %c0_19 = arith.constant 0 : index
    %c0_20 = arith.constant 0 : index
    %31 = vector.load %arg8[%c0_19, %c0_20] : memref<8x3xf32, #tpu.memory_space<vmem>>, vector<8x3xf32>
    tpu.vector_store %arg8[%c0_19, %c0_20], %30 {strides = array<i32>} : memref<8x3xf32, #tpu.memory_space<vmem>>, vector<8x3xf32>,
    return
  }
  func.func @transform_0(%arg0: i32) -> (i32, i32) {
    %c0_i32 = arith.constant 0 : i32
    %c0_i32_0 = arith.constant 0 : i32
    return %arg0, %c0_i32 : i32, i32
  }
  func.func @transform_1(%arg0: i32) -> (i32, i32) {
    %c0_i32 = arith.constant 0 : i32
    %c0_i32_0 = arith.constant 0 : i32
    %c0_i32_1 = arith.constant 0 : i32
    return %c0_i32, %c0_i32_0 : i32, i32
  }
  func.func @transform_2(%arg0: i32) -> (i32, i32) {
    %c0_i32 = arith.constant 0 : i32
    %c0_i32_0 = arith.constant 0 : i32
    %c0_i32_1 = arith.constant 0 : i32
    return %c0_i32, %c0_i32_0 : i32, i32
  }
  func.func @transform_3(%arg0: i32) -> (i32, i32) {
    %c0_i32 = arith.constant 0 : i32
    %c0_i32_0 = arith.constant 0 : i32
    %c0_i32_1 = arith.constant 0 : i32
    return %c0_i32, %c0_i32_0 : i32, i32
  }
  func.func @transform_4(%arg0: i32) -> (i32, i32) {
    %c0_i32 = arith.constant 0 : i32
    %c0_i32_0 = arith.constant 0 : i32
    %c0_i32_1 = arith.constant 0 : i32
    return %c0_i32, %c0_i32_0 : i32, i32
  }
  func.func @transform_5(%arg0: i32) -> (i32, i32) {
    %c0_i32 = arith.constant 0 : i32
    %c0_i32_0 = arith.constant 0 : i32
    %c0_i32_1 = arith.constant 0 : i32
    return %c0_i32, %c0_i32_0 : i32, i32
  }
  func.func @transform_6(%arg0: i32) -> (i32, i32) {
    %c0_i32 = arith.constant 0 : i32
    %c0_i32_0 = arith.constant 0 : i32
    %c0_i32_1 = arith.constant 0 : i32
    return %c0_i32, %c0_i32_0 : i32, i32
  }
  func.func @transform_7(%arg0: i32) -> (i32, i32) {
    %c0_i32 = arith.constant 0 : i32
    %c0_i32_0 = arith.constant 0 : i32
    return %arg0, %c0_i32 : i32, i32
  }
}

</mosaic_0001>

<llo_original>
// kernel: mlp_forward.1
$region0: #{mlp_forward.1}
  #allocation0 [shape = 'u32[]', space=smem, size = 0x4, offset = 0x4, fixed_abs, tag = 'smem constant byte address 0x4 - core index']
  #allocation1 [shape = 'u32[144,128]{1,0:T(1,128)}', space=vmem, size = 0x12000, scoped, tag = 'internal scratch']
  %s0 = inlined_call_operand.vmem [shape: bf16[8,16], index: 0, kind: input, shape index: {}]
  %s1 = inlined_call_operand.vmem [shape: bf16[16,64], index: 1, kind: input, shape index: {}]
  %s2 = inlined_call_operand.vmem [shape: f32[1,64], index: 2, kind: input, shape index: {}]
  %s3 = inlined_call_operand.vmem [shape: bf16[64,32], index: 3, kind: input, shape index: {}]
  %s4 = inlined_call_operand.vmem [shape: f32[1,32], index: 4, kind: input, shape index: {}]
  %s5 = inlined_call_operand.vmem [shape: bf16[32,3], index: 5, kind: input, shape index: {}]
  %s6 = inlined_call_operand.vmem [shape: f32[1,3], index: 6, kind: input, shape index: {}]
  %s7 = inlined_call_operand.vmem [shape: f32[8,3], index: 7, kind: output, shape index: {}]
  %s8 = sld [smem:[#allocation0]]
  $region38: #{mlp_forward.1} parent=0
    _
  %s10 = ssub.s32 1, %s8
  %s11 = scalar_select 0, %s10, %s8
  // Predicated region
  $region2: #{mlp_forward.1} parent=0 // pred_check
    _
  $region3: #{mlp_forward.1} parent=0 // pred_check_branch
    %13 = sbr.rel (0) target = $region5
  $region4: #{mlp_forward.1} parent=0 // pred_region
    _
  $region5: #{mlp_forward.1} parent=0 // pred_fallthru
    _
  // Predicated region
  $region6: #{mlp_forward.1} parent=0 // pred_check
    _
  $region7: #{mlp_forward.1} parent=0 // pred_check_branch
    %15 = sbr.rel (0) target = $region9
  $region8: #{mlp_forward.1} parent=0 // pred_region
    _
  $region9: #{mlp_forward.1} parent=0 // pred_fallthru
    _
  // Predicated region
  $region10: #{mlp_forward.1} parent=0 // pred_check
    _
  $region11: #{mlp_forward.1} parent=0 // pred_check_branch
    %17 = sbr.rel (0) target = $region13
  $region12: #{mlp_forward.1} parent=0 // pred_region
    _
  $region13: #{mlp_forward.1} parent=0 // pred_fallthru
    _
  // Predicated region
  $region14: #{mlp_forward.1} parent=0 // pred_check
    _
  $region15: #{mlp_forward.1} parent=0 // pred_check_branch
    %19 = sbr.rel (0) target = $region17
  $region16: #{mlp_forward.1} parent=0 // pred_region
    _
  $region17: #{mlp_forward.1} parent=0 // pred_fallthru
    _
  // Predicated region
  $region18: #{mlp_forward.1} parent=0 // pred_check
    _
  $region19: #{mlp_forward.1} parent=0 // pred_check_branch
    %21 = sbr.rel (0) target = $region21
  $region20: #{mlp_forward.1} parent=0 // pred_region
    _
  $region21: #{mlp_forward.1} parent=0 // pred_fallthru
    _
  // Predicated region
  $region22: #{mlp_forward.1} parent=0 // pred_check
    _
  $region23: #{mlp_forward.1} parent=0 // pred_check_branch
    %23 = sbr.rel (0) target = $region25
  $region24: #{mlp_forward.1} parent=0 // pred_region
    _
  $region25: #{mlp_forward.1} parent=0 // pred_fallthru
    _
  // Predicated region
  $region26: #{mlp_forward.1} parent=0 // pred_check
    _
  $region27: #{mlp_forward.1} parent=0 // pred_check_branch
    %25 = sbr.rel (0) target = $region29
  $region28: #{mlp_forward.1} parent=0 // pred_region
    _
  $region29: #{mlp_forward.1} parent=0 // pred_fallthru
    _
  %v27 = vld [vmem:[%s0] sm:$0xf]
  %v28 = vld [vmem:[%s1] sm:$0xf]
  %v29 = vld [vmem:[%s1 + $0x4] sm:$0xf]
  %v30 = vld [vmem:[%s2] sm:$0x1]
  %v32 = vlaneseq
  %v33 = vshrl.u32 %v32, 7
  %v34 = vsub.s32 0, %v33
  %v35 = vrot.slane %v30, %v34
  %v39 = vunpack.c.l.b16 %v28
  %v40 = vunpack.c.l.b16 %v29
  %v41 = vpack.c.b16 %v40, %v39
  %vm43 = vcmask 130048
  %v45 = vsel %vm43, %v27, 0
  %47 = vmatprep.subr.bf16.mxu0 0
  %48 = vmatpush1.bf16.msra.mxu0 0
  %49 = vmatprep.subr.bf16.mxu0 0
  %50 = vmatpush1.bf16.msra.mxu0 0
  %51 = vmatprep.subr.bf16.mxu0 0
  %52 = vmatpush1.bf16.msra.mxu0 0
  %53 = vmatprep.subr.bf16.mxu0 0
  %54 = vmatpush1.bf16.msra.mxu0 0
  %55 = vmatprep.subr.bf16.mxu0 0
  %56 = vmatpush1.bf16.msra.mxu0 0
  %57 = vmatprep.subr.bf16.mxu0 0
  %58 = vmatpush1.bf16.msra.mxu0 0
  %59 = vmatprep.subr.bf16.mxu0 0
  %60 = vmatpush1.bf16.msra.mxu0 0
  %61 = vmatprep.subr.bf16.mxu0 0
  %62 = vmatpush1.bf16.msra.mxu0 %v41
  %63 = vmatprep.subr.bf16.mxu0 0
  %64 = vmatpush2.bf16.msra.mxu0 0
  %65 = vmatprep.subr.bf16.mxu0 0
  %66 = vmatpush2.bf16.msra.mxu0 0
  %67 = vmatprep.subr.bf16.mxu0 0
  %68 = vmatpush2.bf16.msra.mxu0 0
  %69 = vmatprep.subr.bf16.mxu0 0
  %70 = vmatpush2.bf16.msra.mxu0 0
  %71 = vmatprep.subr.bf16.mxu0 0
  %72 = vmatpush2.bf16.msra.mxu0 0
  %73 = vmatprep.subr.bf16.mxu0 0
  %74 = vmatpush2.bf16.msra.mxu0 0
  %75 = vmatprep.subr.bf16.mxu0 0
  %76 = vmatpush2.bf16.msra.mxu0 0
  %77 = vmatprep.subr.bf16.mxu0 0
  %78 = vmatpush2.bf16.msra.mxu0 0
  %79 = vmatprep.mubr.bf16.mxu0 0
  %80 = vmatmul.mubr.bf16.gmra.mxu0 %v45
  %v81 = vpop.f32.mrf.mxu0
  %v82 = vadd.f32 %v35, %v81
  %v83 = vpop.f32.mrf.mxu0
  %v84 = vpop.f32.mrf.mxu0
  %v85 = vpop.f32.mrf.mxu0
  %86 = vdwg.mxu0
  %v87 = vmax.f32 %v82, 0.0
  %v88 = vpack.c.bf16 %v87, %v87
  %v89 = vld [vmem:[%s3] sm:$0xf]
  %v90 = vld [vmem:[%s3 + $0x4] sm:$0xf]
  %v91 = vld [vmem:[%s3 + $0x8] sm:$0xf]
  %v92 = vld [vmem:[%s3 + $0xc] sm:$0xf]
  %v93 = vld [vmem:[%s3 + $0x10] sm:$0xf]
  %v94 = vld [vmem:[%s3 + $0x14] sm:$0xf]
  %v95 = vld [vmem:[%s3 + $0x18] sm:$0xf]
  %v96 = vld [vmem:[%s3 + $0x1c] sm:$0xf]
  %v97 = vld [vmem:[%s4] sm:$0x1]
  %v99 = vlaneseq
  %v100 = vshrl.u32 %v99, 7
  %v101 = vsub.s32 0, %v100
  %v102 = vrot.slane %v97, %v101
  %v112 = vunpack.c.l.b16 %v89
  %v113 = vunpack.c.l.b16 %v90
  %v114 = vunpack.c.l.b16 %v91
  %v115 = vunpack.c.l.b16 %v92
  %v116 = vunpack.c.l.b16 %v93
  %v117 = vunpack.c.l.b16 %v94
  %v118 = vunpack.c.l.b16 %v95
  %v119 = vunpack.c.l.b16 %v96
  %v120 = vpack.c.b16 %v113, %v112
  %v121 = vpack.c.b16 %v115, %v114
  %v122 = vpack.c.b16 %v117, %v116
  %v123 = vpack.c.b16 %v119, %v118
  %vm128 = vcmask 523264
  %v130 = vsel %vm128, %v88, 0
  %132 = vmatprep.subr.bf16.mxu0 0
  %133 = vmatpush1.bf16.msra.mxu0 0
  %134 = vmatprep.subr.bf16.mxu0 0
  %135 = vmatpush1.bf16.msra.mxu0 0
  %136 = vmatprep.subr.bf16.mxu0 0
  %137 = vmatpush1.bf16.msra.mxu0 0
  %138 = vmatprep.subr.bf16.mxu0 0
  %139 = vmatpush1.bf16.msra.mxu0 0
  %140 = vmatprep.subr.bf16.mxu0 0
  %141 = vmatpush1.bf16.msra.mxu0 %v123
  %142 = vmatprep.subr.bf16.mxu0 0
  %143 = vmatpush1.bf16.msra.mxu0 %v122
  %144 = vmatprep.subr.bf16.mxu0 0
  %145 = vmatpush1.bf16.msra.mxu0 %v121
  %146 = vmatprep.subr.bf16.mxu0 0
  %147 = vmatpush1.bf16.msra.mxu0 %v120
  %148 = vmatprep.subr.bf16.mxu0 0
  %149 = vmatpush2.bf16.msra.mxu0 0
  %150 = vmatprep.subr.bf16.mxu0 0
  %151 = vmatpush2.bf16.msra.mxu0 0
  %152 = vmatprep.subr.bf16.mxu0 0
  %153 = vmatpush2.bf16.msra.mxu0 0
  %154 = vmatprep.subr.bf16.mxu0 0
  %155 = vmatpush2.bf16.msra.mxu0 0
  %156 = vmatprep.subr.bf16.mxu0 0
  %157 = vmatpush2.bf16.msra.mxu0 0
  %158 = vmatprep.subr.bf16.mxu0 0
  %159 = vmatpush2.bf16.msra.mxu0 0
  %160 = vmatprep.subr.bf16.mxu0 0
  %161 = vmatpush2.bf16.msra.mxu0 0
  %162 = vmatprep.subr.bf16.mxu0 0
  %163 = vmatpush2.bf16.msra.mxu0 0
  %164 = vmatprep.mubr.bf16.mxu0 0
  %165 = vmatmul.mubr.bf16.gmra.mxu0 %v130
  %v166 = vpop.f32.mrf.mxu0
  %v167 = vadd.f32 %v102, %v166
  %v168 = vpop.f32.mrf.mxu0
  %v169 = vpop.f32.mrf.mxu0
  %v170 = vpop.f32.mrf.mxu0
  %171 = vdwg.mxu0
  %v172 = vmax.f32 %v167, 0.0
  %v173 = vpack.c.bf16 %v172, %v172
  %v174 = vld [vmem:[%s5] sm:$0xf]
  %v175 = vld [vmem:[%s5 + $0x4] sm:$0xf]
  %v176 = vld [vmem:[%s5 + $0x8] sm:$0xf]
  %v177 = vld [vmem:[%s5 + $0xc] sm:$0xf]
  %v178 = vld [vmem:[%s6] sm:$0x1]
  %v180 = vlaneseq
  %v181 = vshrl.u32 %v180, 7
  %v182 = vsub.s32 0, %v181
  %v183 = vrot.slane %v178, %v182
  %v189 = vunpack.c.l.b16 %v174
  %v190 = vunpack.c.l.b16 %v175
  %v191 = vunpack.c.l.b16 %v176
  %v192 = vunpack.c.l.b16 %v177
  %v193 = vpack.c.b16 %v190, %v189
  %v194 = vpack.c.b16 %v192, %v191
  %vm197 = vcmask 261120
  %v199 = vsel %vm197, %v173, 0
  %201 = vmatprep.subr.bf16.mxu0 0
  %202 = vmatpush1.bf16.msra.mxu0 0
  %203 = vmatprep.subr.bf16.mxu0 0
  %204 = vmatpush1.bf16.msra.mxu0 0
  %205 = vmatprep.subr.bf16.mxu0 0
  %206 = vmatpush1.bf16.msra.mxu0 0
  %207 = vmatprep.subr.bf16.mxu0 0
  %208 = vmatpush1.bf16.msra.mxu0 0
  %209 = vmatprep.subr.bf16.mxu0 0
  %210 = vmatpush1.bf16.msra.mxu0 0
  %211 = vmatprep.subr.bf16.mxu0 0
  %212 = vmatpush1.bf16.msra.mxu0 0
  %213 = vmatprep.subr.bf16.mxu0 0
  %214 = vmatpush1.bf16.msra.mxu0 %v194
  %215 = vmatprep.subr.bf16.mxu0 0
  %216 = vmatpush1.bf16.msra.mxu0 %v193
  %217 = vmatprep.subr.bf16.mxu0 0
  %218 = vmatpush2.bf16.msra.mxu0 0
  %219 = vmatprep.subr.bf16.mxu0 0
  %220 = vmatpush2.bf16.msra.mxu0 0
  %221 = vmatprep.subr.bf16.mxu0 0
  %222 = vmatpush2.bf16.msra.mxu0 0
  %223 = vmatprep.subr.bf16.mxu0 0
  %224 = vmatpush2.bf16.msra.mxu0 0
  %225 = vmatprep.subr.bf16.mxu0 0
  %226 = vmatpush2.bf16.msra.mxu0 0
  %227 = vmatprep.subr.bf16.mxu0 0
  %228 = vmatpush2.bf16.msra.mxu0 0
  %229 = vmatprep.subr.bf16.mxu0 0
  %230 = vmatpush2.bf16.msra.mxu0 0
  %231 = vmatprep.subr.bf16.mxu0 0
  %232 = vmatpush2.bf16.msra.mxu0 0
  %233 = vmatprep.mubr.bf16.mxu0 0
  %234 = vmatmul.mubr.bf16.gmra.mxu0 %v199
  %v235 = vpop.f32.mrf.mxu0
  %v236 = vadd.f32 %v183, %v235
  %v237 = vpop.f32.mrf.mxu0
  %v238 = vpop.f32.mrf.mxu0
  %v239 = vpop.f32.mrf.mxu0
  %240 = vdwg.mxu0
  %vm241 = vcmask 23552
  %v242 = vsel %vm241, %v236, -inf
  %243 = vmax.xlane.f32.xlu0 %v242
  %v244 = vpop.xlane.xlu0 %243
  %v245 = vsub.f32 %v236, %v244
  %v246 = vmul.f32 %v245, 1.442695
  %v247 = vpow.pop %v246
  %v248 = vsel %vm241, %v247, 0.0
  %249 = vadd.xlane.f32.xlu0 %v248
  %v250 = vpop.xlane.xlu0 %249
  %v251 = vrcp.pop %v250
  %v252 = vmul.f32 %v247, %v251
  %253 = vst.msk [vmem:[%s7] sm:$0xff] %vm241, %v252
  // Predicated region
  $region30: #{mlp_forward.1} parent=0 // pred_check
    _
  $region31: #{mlp_forward.1} parent=0 // pred_check_branch
    %255 = sbr.rel (0) target = $region33
  $region32: #{mlp_forward.1} parent=0 // pred_region
    _
  $region33: #{mlp_forward.1} parent=0 // pred_fallthru
    _
  // Predicated region
  $region34: #{mlp_forward.1} parent=0 // pred_check
    _
  $region35: #{mlp_forward.1} parent=0 // pred_check_branch
    %257 = sbr.rel (0) target = $region37
  $region36: #{mlp_forward.1} parent=0 // pred_region
    _
  $region37: #{mlp_forward.1} parent=0 // pred_fallthru
    _

</llo_original>
